<compile_context>
chip_gen: v5e
topology: v5e:2x2
jax: 0.10.0
libtpu: 0.0.40
codegen_flags: <defaults>
</compile_context>

<pallas_src>
import functools

import jax
import jax.numpy as jnp
import numpy as np
from jax import lax
from jax.experimental import pallas as pl
from jax.experimental.pallas import tpu as pltpu


def _round_up(x: int, m: int) -> int:
    return (x + m - 1) // m * m


def _contrastive_loss_kernel(i_idx_ref, j_idx_ref,        # scalar prefetch (SMEM)
                             feat_i_ref, feat_j_ref,      # (tb, Dp) feature tiles
                             inv_col_ref, inv_row_ref,    # (tb, 1) / (1, tb) f32
                             lab_col_ref, lab_row_ref,    # (tb, 1) / (1, tb) i32
                             out_ref,                     # (1, 128) f32 lane-dense
                             acc_ref,                     # (1, 1) f32 SMEM scratch
                             *, inv_temperature, margin, pos_margin,
                             neg_pos_const, inv_count):
    t = pl.program_id(0)

    @pl.when(t == 0)
    def _init():
        acc_ref[0, 0] = jnp.float32(0.0)

    # Raw similarity tile on the MXU: contract the hidden dim of both operands
    # -> (tb, tb); no materialized transpose of the column tile.
    sim = lax.dot_general(
        feat_i_ref[...], feat_j_ref[...],
        dimension_numbers=(((1,), (1,)), ((), ())),
        preferred_element_type=jnp.float32,
    )

    # Hoisted L2 normalization: post-scale with the precomputed inverse norms.
    # Padded rows/cols carry inv_norm == 0.0 (doubles as the validity mask).
    inv_i = inv_col_ref[...]                        # (tb, 1) f32
    inv_j = inv_row_ref[...]                        # (1, tb) f32
    sim = sim * inv_i * inv_j

    is_pos = lab_col_ref[...] == lab_row_ref[...]   # (tb, tb) bool, VPU broadcast-cmp

    # Fused per-element loss (identical to the reference, f32 epilogue):
    #   same label : -log(exp(sim/T) + 1e-8) + max(margin, 0)
    #   diff label : -log(1 + 1e-8)          + max(margin - sim, 0)
    pos_branch = -jnp.log(jnp.exp(sim * inv_temperature) + 1e-8) + pos_margin
    neg_branch = jnp.maximum(margin - sim, 0.0) + neg_pos_const
    loss_tile = jnp.where(is_pos, pos_branch, neg_branch)

    # Zero out contributions from padded rows / columns.
    valid = jnp.logical_and(inv_i > 0.0, inv_j > 0.0)
    loss_tile = jnp.where(valid, loss_tile, 0.0)

    # Symmetry: only upper-triangular tile pairs are visited; off-diagonal
    # tiles stand in for their mirror image (weight 2), diagonal tiles weight 1.
    weight = jnp.where(i_idx_ref[t] == j_idx_ref[t],
                       jnp.float32(1.0), jnp.float32(2.0))
    acc_ref[0, 0] += weight * jnp.sum(loss_tile)

    @pl.when(t == pl.num_programs(0) - 1)
    def _finalize():
        out_ref[...] = jnp.full(out_ref.shape, acc_ref[0, 0] * inv_count,
                                dtype=jnp.float32)


def contrastive_loss(features, labels, *, temperature=0.07, margin=0.5,
                     block_b=256, feature_dtype=jnp.bfloat16):
    """features: (B, D) float, labels: (B,) int -> scalar f32 loss.

    feature_dtype=jnp.bfloat16 halves HBM feature traffic (native MXU input on
    v5e/v6e/v7x); pass jnp.float32 for bit-faithful parity with the module.
    block_b: square similarity-tile size; 256 fits all chips (multiple of 128
    for v5e, of 256 for v6e/v7x MXU, within v7x's 64 MiB VMEM); 512 is better
    on v6e's 128 MiB VMEM with a raised vmem limit.
    """
    b, d = features.shape

    feats = features.astype(feature_dtype)
    feats_f32 = feats.astype(jnp.float32)

    # ---- tiling / padding ---------------------------------------------------
    block_b = _round_up(int(block_b), 128)      # lane constraint of the (1, tb) rows
    if b <= block_b:
        b_pad = _round_up(b, 8)
        tile_b = b_pad                          # single tile along the batch dim
    else:
        tile_b = block_b
        b_pad = _round_up(b, tile_b)
    d_pad = _round_up(d, 128)                   # lane-dense hidden dim

    feats_p = jnp.pad(feats, ((0, b_pad - b), (0, d_pad - d)))

    # Hoisted L2 norm: computed once here (O(B*D)), post-applied per tile.
    # Padded rows get inv_norm == 0 which also serves as the validity mask.
    sum_sq = jnp.sum(feats_f32 * feats_f32, axis=1, keepdims=True)
    inv_norm = lax.rsqrt(jnp.maximum(sum_sq, 1e-24))     # == 1 / max(||x||, 1e-12)
    inv_col = jnp.pad(inv_norm.astype(jnp.float32), ((0, b_pad - b), (0, 0)))
    inv_row = inv_col.reshape(1, b_pad)

    lab_col = jnp.pad(labels.reshape(b, 1).astype(jnp.int32), ((0, b_pad - b), (0, 0)))
    lab_row = lab_col.reshape(1, b_pad)

    # Upper-triangular (i <= j) tile pairs -> ~2x less traffic and MXU work.
    num_bt = b_pad // tile_b
    tri_i, tri_j = np.triu_indices(num_bt)
    i_idx = jnp.asarray(tri_i, dtype=jnp.int32)
    j_idx = jnp.asarray(tri_j, dtype=jnp.int32)
    num_pairs = int(tri_i.shape[0])

    # ---- constants ----------------------------------------------------------
    inv_t = float(np.float32(1.0) / np.float32(temperature))
    pos_margin = float(max(float(margin), 0.0))          # clamp(margin - 0, min=0)
    neg_pos_const = float(-np.log(np.float32(1.0) + np.float32(1e-8)))
    inv_count = 1.0 / float(b * b)                       # mean over the REAL batch

    kernel = functools.partial(
        _contrastive_loss_kernel,
        inv_temperature=inv_t, margin=float(margin), pos_margin=pos_margin,
        neg_pos_const=neg_pos_const, inv_count=inv_count)

    # index_maps receive the scalar-prefetch refs as trailing positional args.
    row_map = lambda t, i_ref, j_ref: (i_ref[t], 0)
    col_map = lambda t, i_ref, j_ref: (j_ref[t], 0)
    row_vec_map = lambda t, i_ref, j_ref: (0, j_ref[t])
    out_map = lambda t, i_ref, j_ref: (0, 0)

    itemsize = np.dtype(feature_dtype).itemsize
    tile_bytes = 2 * tile_b * d_pad * itemsize + 4 * tile_b * 4   # feat tiles + aux
    vmem_limit = int(min(64 * 1024 * 1024,
                         max(32 * 1024 * 1024, 2 * tile_bytes + (4 << 20))))

    grid_spec = pltpu.PrefetchScalarGridSpec(
        num_scalar_prefetch=2,
        grid=(num_pairs,),
        in_specs=[
            pl.BlockSpec((tile_b, d_pad), row_map),      # row feature tile
            pl.BlockSpec((tile_b, d_pad), col_map),      # column feature tile
            pl.BlockSpec((tile_b, 1), row_map),          # inv_norm column
            pl.BlockSpec((1, tile_b), row_vec_map),      # inv_norm row (lane-dense)
            pl.BlockSpec((tile_b, 1), row_map),          # label column
            pl.BlockSpec((1, tile_b), row_vec_map),      # label row (lane-dense)
        ],
        out_specs=pl.BlockSpec((1, 128), out_map),
        scratch_shapes=[pltpu.SMEM((1, 1), jnp.float32)],
    )

    out = pl.pallas_call(
        kernel,
        out_shape=jax.ShapeDtypeStruct((1, 128), jnp.float32),
        grid_spec=grid_spec,
        compiler_params=pltpu.CompilerParams(
            dimension_semantics=("arbitrary",),          # resident scalar accumulator
            vmem_limit_bytes=vmem_limit,
        ),
    )(i_idx, j_idx, feats_p, feats_p, inv_col, inv_row, lab_col, lab_row)
    return out[0, 0]


def _reference_loss(features, labels, *, temperature=0.07, margin=0.5):
    """Pure-JAX transcription of the PyTorch module."""
    x = features.astype(jnp.float32)
    norm = jnp.sqrt(jnp.sum(x * x, axis=1, keepdims=True))
    xn = x / jnp.maximum(norm, 1e-12)
    sim = xn @ xn.T
    lab = labels.reshape(-1, 1)
    lm = (lab == lab.T).astype(jnp.float32)
    pos_loss = -jnp.log(jnp.exp((sim * lm) / temperature) + 1e-8)
    neg_loss = jnp.maximum(margin - sim * (1.0 - lm), 0.0)
    return pos_loss.mean() + neg_loss.mean()


if __name__ == "__main__":
    key = jax.random.PRNGKey(0)
    kf, kl = jax.random.split(key)

    # Small shapes consistent with the module (batch=8, hidden=32).
    B, D = 8, 32
    features = jax.random.normal(kf, (B, D), dtype=jnp.float32)
    labels = jax.random.randint(kl, (B,), 0, 3, dtype=jnp.int32)

    # 1) Exact-semantics path (f32 features) vs the module reference.
    loss_f32 = jax.block_until_ready(
        contrastive_loss(features, labels, temperature=0.07, margin=0.5,
                         feature_dtype=jnp.float32))
    ref_f32 = jax.block_until_ready(
        _reference_loss(features, labels, temperature=0.07, margin=0.5))
    assert jnp.allclose(loss_f32, ref_f32, rtol=1e-4, atol=1e-4), (loss_f32, ref_f32)

    # 2) bf16 feature path (default; halves HBM traffic) vs the reference
    #    evaluated on the same bf16-rounded features.
    loss_bf16 = jax.block_until_ready(
        contrastive_loss(features, labels, temperature=0.07, margin=0.5,
                         feature_dtype=jnp.bfloat16))
    ref_bf16 = jax.block_until_ready(
        _reference_loss(features.astype(jnp.bfloat16).astype(jnp.float32), labels,
                        temperature=0.07, margin=0.5))
    assert jnp.allclose(loss_bf16, ref_bf16, rtol=1e-3, atol=1e-3), (loss_bf16, ref_bf16)

    # 3) Multi-tile path: exercises the upper-triangular tile grid, batch/hidden
    #    padding and the validity masking (B, D not tile multiples).
    B2, D2 = 300, 200
    f2 = jax.random.normal(jax.random.PRNGKey(1), (B2, D2), dtype=jnp.float32)
    l2 = jax.random.randint(jax.random.PRNGKey(2), (B2,), 0, 5, dtype=jnp.int32)
    loss2 = jax.block_until_ready(
        contrastive_loss(f2, l2, temperature=0.07, margin=0.5,
                         feature_dtype=jnp.float32, block_b=128))
    ref2 = jax.block_until_ready(
        _reference_loss(f2, l2, temperature=0.07, margin=0.5))
    assert jnp.allclose(loss2, ref2, rtol=2e-3, atol=2e-3), (loss2, ref2)

    print("KERNEL_OK")
</pallas_src>

<mosaic_0001>
module attributes {stable_mosaic.version = 11 : i64} {
  func.func @_contrastive_loss_kernel(%arg0: i32, %arg1: memref<1xi32, #tpu.memory_space<smem>>, %arg2: memref<1xi32, #tpu.memory_space<smem>>, %arg3: memref<8x128xf32, #tpu.memory_space<vmem>>, %arg4: memref<8x128xf32, #tpu.memory_space<vmem>>, %arg5: memref<8x1xf32, #tpu.memory_space<vmem>>, %arg6: memref<1x8xf32, #tpu.memory_space<vmem>>, %arg7: memref<8x1xi32, #tpu.memory_space<vmem>>, %arg8: memref<1x8xi32, #tpu.memory_space<vmem>>, %arg9: memref<1x128xf32, #tpu.memory_space<vmem>>, %arg10: memref<1x1xf32, #tpu.memory_space<smem>>) attributes {dimension_semantics = [#tpu.dimension_semantics<arbitrary>], iteration_bounds = array<i64: 1>, scalar_prefetch = 2 : i64, scratch_operands = 1 : i64, tpu.core_type = #tpu.core_type<tc>, window_params = [{transform_indices = @transform_0, window_bounds = array<i64: 8, 128>}, {transform_indices = @transform_1, window_bounds = array<i64: 8, 128>}, {transform_indices = @transform_2, window_bounds = array<i64: 8, 1>}, {transform_indices = @transform_3, window_bounds = array<i64: 1, 8>}, {transform_indices = @transform_4, window_bounds = array<i64: 8, 1>}, {transform_indices = @transform_5, window_bounds = array<i64: 1, 8>}, {pipeline_mode = #tpu.pipeline_mode<synchronous>, transform_indices = @transform_6, window_bounds = array<i64: 1, 128>}]} {
    %c0_i32 = arith.constant 0 : i32
    %0 = arith.cmpi eq, %arg0, %c0_i32 : i32
    %1 = arith.extui %0 : i1 to i32
    %c0_i32_0 = arith.constant 0 : i32
    %2 = arith.cmpi ne, %1, %c0_i32_0 : i32
    scf.if %2 {
      %cst_31 = arith.constant 0.000000e+00 : f32
      %c0_32 = arith.constant 0 : index
      %c0_33 = arith.constant 0 : index
      %60 = memref.load %arg10[%c0_32, %c0_33] : memref<1x1xf32, #tpu.memory_space<smem>>
      memref.store %cst_31, %arg10[%c0_32, %c0_33] : memref<1x1xf32, #tpu.memory_space<smem>>
    } else {
    }
    %c0 = arith.constant 0 : index
    %c0_1 = arith.constant 0 : index
    %3 = vector.load %arg3[%c0, %c0_1] : memref<8x128xf32, #tpu.memory_space<vmem>>, vector<8x128xf32>
    %c0_2 = arith.constant 0 : index
    %c0_3 = arith.constant 0 : index
    %4 = vector.load %arg4[%c0_2, %c0_3] : memref<8x128xf32, #tpu.memory_space<vmem>>, vector<8x128xf32>
    %cst = arith.constant dense<0.000000e+00> : vector<8x8xf32>
    %5 = tpu.matmul %3, %4, %cst {dimension_numbers = #tpu.dot_dimension_numbers<[1], [1], [0], [0], [0, 0, 1, 0], [], []>} : vector<8x128xf32>, vector<8x128xf32>, vector<8x8xf32> -> vector<8x8xf32>
    %c0_4 = arith.constant 0 : index
    %c0_5 = arith.constant 0 : index
    %6 = vector.load %arg5[%c0_4, %c0_5] : memref<8x1xf32, #tpu.memory_space<vmem>>, vector<8x1xf32>
    %c0_6 = arith.constant 0 : index
    %c0_7 = arith.constant 0 : index
    %7 = vector.load %arg6[%c0_6, %c0_7] : memref<1x8xf32, #tpu.memory_space<vmem>>, vector<1x8xf32>
    %8 = vector.broadcast %6 : vector<8x1xf32> to vector<8x8xf32>
    %9 = arith.mulf %5, %8 : vector<8x8xf32>
    %10 = vector.broadcast %7 : vector<1x8xf32> to vector<8x8xf32>
    %11 = arith.mulf %9, %10 : vector<8x8xf32>
    %c0_8 = arith.constant 0 : index
    %c0_9 = arith.constant 0 : index
    %12 = vector.load %arg7[%c0_8, %c0_9] : memref<8x1xi32, #tpu.memory_space<vmem>>, vector<8x1xi32>
    %c0_10 = arith.constant 0 : index
    %c0_11 = arith.constant 0 : index
    %13 = vector.load %arg8[%c0_10, %c0_11] : memref<1x8xi32, #tpu.memory_space<vmem>>, vector<1x8xi32>
    %14 = vector.broadcast %12 : vector<8x1xi32> to vector<8x8xi32>
    %15 = vector.broadcast %13 : vector<1x8xi32> to vector<8x8xi32>
    %16 = arith.cmpi eq, %14, %15 : vector<8x8xi32>
    %cst_12 = arith.constant 14.2857141 : f32
    %17 = vector.broadcast %cst_12 : f32 to vector<8x8xf32>
    %18 = arith.mulf %11, %17 : vector<8x8xf32>
    %19 = math.exp %18 : vector<8x8xf32>
    %cst_13 = arith.constant 9.99999993E-9 : f32
    %20 = vector.broadcast %cst_13 : f32 to vector<8x8xf32>
    %21 = arith.addf %19, %20 : vector<8x8xf32>
    %22 = math.log %21 : vector<8x8xf32>
    %cst_14 = arith.constant 0.000000e+00 : f32
    %23 = vector.broadcast %cst_14 : f32 to vector<8x8xf32>
    %24 = arith.subf %23, %22 : vector<8x8xf32>
    %cst_15 = arith.constant 5.000000e-01 : f32
    %25 = vector.broadcast %cst_15 : f32 to vector<8x8xf32>
    %26 = arith.addf %24, %25 : vector<8x8xf32>
    %cst_16 = arith.constant 5.000000e-01 : f32
    %27 = vector.broadcast %cst_16 : f32 to vector<8x8xf32>
    %28 = arith.subf %27, %11 : vector<8x8xf32>
    %cst_17 = arith.constant 0.000000e+00 : f32
    %29 = vector.broadcast %cst_17 : f32 to vector<8x8xf32>
    %30 = arith.maximumf %28, %29 : vector<8x8xf32>
    %cst_18 = arith.constant -0.000000e+00 : f32
    %31 = vector.broadcast %cst_18 : f32 to vector<8x8xf32>
    %32 = arith.addf %30, %31 : vector<8x8xf32>
    %33 = arith.select %16, %26, %32 : vector<8x8xi1>, vector<8x8xf32>
    %cst_19 = arith.constant 0.000000e+00 : f32
    %34 = vector.broadcast %cst_19 : f32 to vector<8x1xf32>
    %35 = arith.cmpf ogt, %6, %34 : vector<8x1xf32>
    %cst_20 = arith.constant 0.000000e+00 : f32
    %36 = vector.broadcast %cst_20 : f32 to vector<1x8xf32>
    %37 = arith.cmpf ogt, %7, %36 : vector<1x8xf32>
    %38 = vector.broadcast %35 : vector<8x1xi1> to vector<8x8xi1>
    %39 = vector.broadcast %37 : vector<1x8xi1> to vector<8x8xi1>
    %40 = arith.andi %38, %39 : vector<8x8xi1>
    %cst_21 = arith.constant 0.000000e+00 : f32
    %41 = vector.broadcast %cst_21 : f32 to vector<8x8xf32>
    %42 = arith.select %40, %33, %41 : vector<8x8xi1>, vector<8x8xf32>
    %43 = arith.index_cast %arg0 : i32 to index
    %44 = memref.load %arg1[%43] : memref<1xi32, #tpu.memory_space<smem>>
    %45 = arith.index_cast %arg0 : i32 to index
    %46 = memref.load %arg2[%45] : memref<1xi32, #tpu.memory_space<smem>>
    %47 = arith.cmpi eq, %44, %46 : i32
    %cst_22 = arith.constant 1.000000e+00 : f32
    %cst_23 = arith.constant 2.000000e+00 : f32
    %48 = arith.select %47, %cst_22, %cst_23 : f32
    %c0_24 = arith.constant 0 : index
    %c0_25 = arith.constant 0 : index
    %49 = memref.load %arg10[%c0_24, %c0_25] : memref<1x1xf32, #tpu.memory_space<smem>>
    %50 = vector.shape_cast %42 : vector<8x8xf32> to vector<1x8x8xf32>
    %cst_26 = arith.constant dense<0.000000e+00> : vector<1xf32>
    %51 = vector.multi_reduction <add>, %50, %cst_26 [1, 2] : vector<1x8x8xf32> to vector<1xf32>
    %52 = vector.shape_cast %51 : vector<1xf32> to vector<1x1x1xf32>
    %53 = vector.extract %52[0, 0, 0] : f32 from vector<1x1x1xf32>
    %54 = arith.mulf %48, %53 : f32
    %55 = arith.addf %49, %54 : f32
    %c0_27 = arith.constant 0 : index
    %c0_28 = arith.constant 0 : index
    %56 = memref.load %arg10[%c0_27, %c0_28] : memref<1x1xf32, #tpu.memory_space<smem>>
    memref.store %55, %arg10[%c0_27, %c0_28] : memref<1x1xf32, #tpu.memory_space<smem>>
    %c0_i32_29 = arith.constant 0 : i32
    %57 = arith.cmpi eq, %arg0, %c0_i32_29 : i32
    %58 = arith.extui %57 : i1 to i32
    %c0_i32_30 = arith.constant 0 : i32
    %59 = arith.cmpi ne, %58, %c0_i32_30 : i32
    scf.if %59 {
      %c0_31 = arith.constant 0 : index
      %c0_32 = arith.constant 0 : index
      %60 = memref.load %arg10[%c0_31, %c0_32] : memref<1x1xf32, #tpu.memory_space<smem>>
      %cst_33 = arith.constant 1.562500e-02 : f32
      %61 = arith.mulf %60, %cst_33 : f32
      %62 = vector.broadcast %61 : f32 to vector<1x128xf32>
      %c0_34 = arith.constant 0 : index
      %c0_35 = arith.constant 0 : index
      %63 = vector.load %arg9[%c0_34, %c0_35] : memref<1x128xf32, #tpu.memory_space<vmem>>, vector<1x128xf32>
      tpu.vector_store %arg9[%c0_34, %c0_35], %62 {strides = array<i32>} : memref<1x128xf32, #tpu.memory_space<vmem>>, vector<1x128xf32>,
    } else {
    }
    return
  }
  func.func @transform_0(%arg0: i32, %arg1: memref<1xi32, #tpu.memory_space<smem>>, %arg2: memref<1xi32, #tpu.memory_space<smem>>) -> (i32, i32) {
    %0 = arith.index_cast %arg0 : i32 to index
    %1 = memref.load %arg1[%0] : memref<1xi32, #tpu.memory_space<smem>>
    %c0_i32 = arith.constant 0 : i32
    %c0_i32_0 = arith.constant 0 : i32
    return %1, %c0_i32 : i32, i32
  }
  func.func @transform_1(%arg0: i32, %arg1: memref<1xi32, #tpu.memory_space<smem>>, %arg2: memref<1xi32, #tpu.memory_space<smem>>) -> (i32, i32) {
    %0 = arith.index_cast %arg0 : i32 to index
    %1 = memref.load %arg2[%0] : memref<1xi32, #tpu.memory_space<smem>>
    %c0_i32 = arith.constant 0 : i32
    %c0_i32_0 = arith.constant 0 : i32
    return %1, %c0_i32 : i32, i32
  }
  func.func @transform_2(%arg0: i32, %arg1: memref<1xi32, #tpu.memory_space<smem>>, %arg2: memref<1xi32, #tpu.memory_space<smem>>) -> (i32, i32) {
    %0 = arith.index_cast %arg0 : i32 to index
    %1 = memref.load %arg1[%0] : memref<1xi32, #tpu.memory_space<smem>>
    %c0_i32 = arith.constant 0 : i32
    %c0_i32_0 = arith.constant 0 : i32
    return %1, %c0_i32 : i32, i32
  }
  func.func @transform_3(%arg0: i32, %arg1: memref<1xi32, #tpu.memory_space<smem>>, %arg2: memref<1xi32, #tpu.memory_space<smem>>) -> (i32, i32) {
    %0 = arith.index_cast %arg0 : i32 to index
    %1 = memref.load %arg2[%0] : memref<1xi32, #tpu.memory_space<smem>>
    %c0_i32 = arith.constant 0 : i32
    %c0_i32_0 = arith.constant 0 : i32
    return %c0_i32, %1 : i32, i32
  }
  func.func @transform_4(%arg0: i32, %arg1: memref<1xi32, #tpu.memory_space<smem>>, %arg2: memref<1xi32, #tpu.memory_space<smem>>) -> (i32, i32) {
    %0 = arith.index_cast %arg0 : i32 to index
    %1 = memref.load %arg1[%0] : memref<1xi32, #tpu.memory_space<smem>>
    %c0_i32 = arith.constant 0 : i32
    %c0_i32_0 = arith.constant 0 : i32
    return %1, %c0_i32 : i32, i32
  }
  func.func @transform_5(%arg0: i32, %arg1: memref<1xi32, #tpu.memory_space<smem>>, %arg2: memref<1xi32, #tpu.memory_space<smem>>) -> (i32, i32) {
    %0 = arith.index_cast %arg0 : i32 to index
    %1 = memref.load %arg2[%0] : memref<1xi32, #tpu.memory_space<smem>>
    %c0_i32 = arith.constant 0 : i32
    %c0_i32_0 = arith.constant 0 : i32
    return %c0_i32, %1 : i32, i32
  }
  func.func @transform_6(%arg0: i32, %arg1: memref<1xi32, #tpu.memory_space<smem>>, %arg2: memref<1xi32, #tpu.memory_space<smem>>) -> (i32, i32) {
    %c0_i32 = arith.constant 0 : i32
    %c0_i32_0 = arith.constant 0 : i32
    %c0_i32_1 = arith.constant 0 : i32
    return %c0_i32, %c0_i32_0 : i32, i32
  }
}

</mosaic_0001>

<llo_original>
// kernel: tpu_custom_call.1
$region0: #{tpu_custom_call.1}
  #allocation0 [shape = 'u32[]', space=smem, size = 0x4, offset = 0x4, fixed_abs, tag = 'smem constant byte address 0x4 - core index']
  #allocation1 [shape = 'u32[72,128]{1,0:T(1,128)}', space=vmem, size = 0x9000, scoped, tag = 'internal scratch']
  #allocation2 [shape = 'f32[1,1]{1,0:T(1,128)}', space=smem, size = 0x200, scoped, tag = 'scratch operand']
  #allocation3 [shape = 's32[1]{0}', space=sflag, size = 0x4, scoped, tag = 'scoped memory for tpu_custom_call.1']
  #allocation4 [shape = 's32[1]{0:T(128)S(6)}', space=smem, size = 0x200, scoped, tag = 'prefetched SMEM operand 0']
  #allocation5 [shape = 's32[1]{0:T(128)S(6)}', space=smem, size = 0x200, scoped, tag = 'prefetched SMEM operand 1']
  %s0 = inlined_call_operand.<no memory space> [shape: s32[1], index: 0, kind: input, shape index: {}]
  %s1 = inlined_call_operand.<no memory space> [shape: s32[1], index: 1, kind: input, shape index: {}]
  %s2 = inlined_call_operand.vmem [shape: f32[8,128], index: 2, kind: input, shape index: {}]
  %s3 = inlined_call_operand.vmem [shape: f32[8,128], index: 3, kind: input, shape index: {}]
  %s4 = inlined_call_operand.vmem [shape: f32[8,1], index: 4, kind: input, shape index: {}]
  %s5 = inlined_call_operand.vmem [shape: f32[1,8], index: 5, kind: input, shape index: {}]
  %s6 = inlined_call_operand.vmem [shape: s32[8,1], index: 6, kind: input, shape index: {}]
  %s7 = inlined_call_operand.vmem [shape: s32[1,8], index: 7, kind: input, shape index: {}]
  %s8 = inlined_call_operand.hbm [shape: f32[1,128], index: 8, kind: output, shape index: {}]
  %s9 = sld [smem:[#allocation0]]
  $region42: #{tpu_custom_call.1} parent=0
    _
  %s11 = ssub.s32 1, %s9
  %s12 = scalar_select 0, %s11, %s9
  %13 = sst [smem:[#allocation4]] %s0
  %14 = sst [smem:[#allocation5]] %s1
  $region1: #{tpu_custom_call.1} parent=0
    #allocation6 [shape = 'u8[512]{0}', space=vmem, size = 0x400, scoped, tag = 'output window, operand 0, single buffered']
    #allocation7 [shape = 's32[1]{0}', space=sflag, size = 0x4, scoped, tag = 'scoped memory for tpu_custom_call.1']
    %15 = vsyncpa [#allocation7], 0
    // Predicated region
    $region2: #{tpu_custom_call.1} parent=1 // pred_check
      _
    $region3: #{tpu_custom_call.1} parent=1 // pred_check_branch
      %17 = sbr.rel (0) target = $region5
    $region4: #{tpu_custom_call.1} parent=1 // pred_region
      %s18 = sld [smem:[#allocation4]]
      %p19 = scmp.lt.s32.totalorder %s18, 0
      %s20 = scalar_select %p19, %s18, 0
      %s21 = smul.addr %s20, 8
      %s22 = scalar_lea.vmem %s2, %s21
      %s23 = sld [smem:[#allocation4]]
    $region5: #{tpu_custom_call.1} parent=1 // pred_fallthru
      _
    // Predicated region
    $region6: #{tpu_custom_call.1} parent=1 // pred_check
      _
    $region7: #{tpu_custom_call.1} parent=1 // pred_check_branch
      %25 = sbr.rel (0) target = $region9
    $region8: #{tpu_custom_call.1} parent=1 // pred_region
      %s26 = sld [smem:[#allocation5]]
      %p27 = scmp.lt.s32.totalorder %s26, 0
      %s28 = scalar_select %p27, %s26, 0
      %s29 = smul.addr %s28, 8
      %s30 = scalar_lea.vmem %s3, %s29
      %s31 = sld [smem:[#allocation5]]
    $region9: #{tpu_custom_call.1} parent=1 // pred_fallthru
      _
    // Predicated region
    $region10: #{tpu_custom_call.1} parent=1 // pred_check
      _
    $region11: #{tpu_custom_call.1} parent=1 // pred_check_branch
      %33 = sbr.rel (0) target = $region13
    $region12: #{tpu_custom_call.1} parent=1 // pred_region
      %s34 = sld [smem:[#allocation4]]
      %p35 = scmp.lt.s32.totalorder %s34, 0
      %s36 = scalar_select %p35, %s34, 0
      %s37 = smul.addr %s36, 8
      %s38 = scalar_lea.vmem %s4, %s37
      %s39 = sld [smem:[#allocation4]]
    $region13: #{tpu_custom_call.1} parent=1 // pred_fallthru
      _
    // Predicated region
    $region14: #{tpu_custom_call.1} parent=1 // pred_check
      _
    $region15: #{tpu_custom_call.1} parent=1 // pred_check_branch
      %41 = sbr.rel (0) target = $region17
    $region16: #{tpu_custom_call.1} parent=1 // pred_region
      %s42 = sld [smem:[#allocation5]]
      %p43 = scmp.lt.s32.totalorder %s42, 0
      %s44 = scalar_select %p43, %s42, 0
      %s45 = scalar_lea.vmem %s5, %s44
      %s46 = sld [smem:[#allocation5]]
    $region17: #{tpu_custom_call.1} parent=1 // pred_fallthru
      _
    // Predicated region
    $region18: #{tpu_custom_call.1} parent=1 // pred_check
      _
    $region19: #{tpu_custom_call.1} parent=1 // pred_check_branch
      %48 = sbr.rel (0) target = $region21
    $region20: #{tpu_custom_call.1} parent=1 // pred_region
      %s49 = sld [smem:[#allocation4]]
      %p50 = scmp.lt.s32.totalorder %s49, 0
      %s51 = scalar_select %p50, %s49, 0
      %s52 = smul.addr %s51, 8
      %s53 = scalar_lea.vmem %s6, %s52
      %s54 = sld [smem:[#allocation4]]
    $region21: #{tpu_custom_call.1} parent=1 // pred_fallthru
      _
    // Predicated region
    $region22: #{tpu_custom_call.1} parent=1 // pred_check
      _
    $region23: #{tpu_custom_call.1} parent=1 // pred_check_branch
      %56 = sbr.rel (0) target = $region25
    $region24: #{tpu_custom_call.1} parent=1 // pred_region
      %s57 = sld [smem:[#allocation5]]
      %p58 = scmp.lt.s32.totalorder %s57, 0
      %s59 = scalar_select %p58, %s57, 0
      %s60 = scalar_lea.vmem %s7, %s59
      %s61 = sld [smem:[#allocation5]]
    $region25: #{tpu_custom_call.1} parent=1 // pred_fallthru
      _
    %s62 = sld [smem:[#allocation4]]
    %p63 = scmp.lt.s32.totalorder %s62, 0
    %s64 = scalar_select %p63, %s62, 0
    %s65 = smul.addr %s64, 8
    %s66 = scalar_lea.vmem %s2, %s65
    %s67 = sld [smem:[#allocation5]]
    %p68 = scmp.lt.s32.totalorder %s67, 0
    %s69 = scalar_select %p68, %s67, 0
    %s70 = smul.addr %s69, 8
    %s71 = scalar_lea.vmem %s3, %s70
    %s72 = sld [smem:[#allocation4]]
    %p73 = scmp.lt.s32.totalorder %s72, 0
    %s74 = scalar_select %p73, %s72, 0
    %s75 = smul.addr %s74, 8
    %s76 = scalar_lea.vmem %s4, %s75
    %s77 = sld [smem:[#allocation5]]
    %p78 = scmp.lt.s32.totalorder %s77, 0
    %s79 = scalar_select %p78, %s77, 0
    %s80 = scalar_lea.vmem %s5, %s79
    %s81 = sld [smem:[#allocation4]]
    %p82 = scmp.lt.s32.totalorder %s81, 0
    %s83 = scalar_select %p82, %s81, 0
    %s84 = smul.addr %s83, 8
    %s85 = scalar_lea.vmem %s6, %s84
    %s86 = sld [smem:[#allocation5]]
    %p87 = scmp.lt.s32.totalorder %s86, 0
    %s88 = scalar_select %p87, %s86, 0
    %s89 = scalar_lea.vmem %s7, %s88
    %s90 = sld [smem:[#allocation4]]
    %p91 = scmp.lt.s32.totalorder %s90, 0
    %s92 = scalar_select %p91, %s90, 0
    %s93 = smul.addr %s92, 8
    %s94 = scalar_lea.vmem %s2, %s93
    %s95 = sld [smem:[#allocation4]]
    %s96 = sld [smem:[#allocation5]]
    %p97 = scmp.lt.s32.totalorder %s96, 0
    %s98 = scalar_select %p97, %s96, 0
    %s99 = smul.addr %s98, 8
    %s100 = scalar_lea.vmem %s3, %s99
    %s101 = sld [smem:[#allocation5]]
    %s102 = sld [smem:[#allocation4]]
    %p103 = scmp.lt.s32.totalorder %s102, 0
    %s104 = scalar_select %p103, %s102, 0
    %s105 = smul.addr %s104, 8
    %s106 = scalar_lea.vmem %s4, %s105
    %s107 = sld [smem:[#allocation4]]
    %s108 = sld [smem:[#allocation5]]
    %p109 = scmp.lt.s32.totalorder %s108, 0
    %s110 = scalar_select %p109, %s108, 0
    %s111 = scalar_lea.vmem %s5, %s110
    %s112 = sld [smem:[#allocation5]]
    %s113 = sld [smem:[#allocation4]]
    %p114 = scmp.lt.s32.totalorder %s113, 0
    %s115 = scalar_select %p114, %s113, 0
    %s116 = smul.addr %s115, 8
    %s117 = scalar_lea.vmem %s6, %s116
    %s118 = sld [smem:[#allocation4]]
    %s119 = sld [smem:[#allocation5]]
    %p120 = scmp.lt.s32.totalorder %s119, 0
    %s121 = scalar_select %p120, %s119, 0
    %s122 = scalar_lea.vmem %s7, %s121
    %s123 = sld [smem:[#allocation5]]
    %p124 = scmp.eq.s32.totalorder 0, 0
    // Predicated region
    $region26: #{tpu_custom_call.1} parent=1 // pred_check
      %p125 = pneg %p124
    $region27: #{tpu_custom_call.1} parent=1 // pred_check_branch
      %127 = sbr.rel (%p125) target = $region29
    $region28: #{tpu_custom_call.1} parent=1 // pred_region
      %s128 = scalar_lea.smem [#allocation2], 0
      %129 = sst [smem:[%s128]] 0.0
    $region29: #{tpu_custom_call.1} parent=1 // pred_fallthru
      _
    %v130 = vld [vmem:[%s94] sm:$0xff]
    %v131 = vld [vmem:[%s100] sm:$0xff]
    %132 = vmatpush.xpose.msra.mxu0 0.0
    %133 = vmatpush.xpose.msra.mxu0 0.0
    %134 = vmatpush.xpose.msra.mxu0 0.0
    %135 = vmatpush.xpose.msra.mxu0 0.0
    %136 = vmatpush.xpose.msra.mxu0 0.0
    %137 = vmatpush.xpose.msra.mxu0 0.0
    %138 = vmatpush.xpose.msra.mxu0 0.0
    %139 = vmatpush.xpose.msra.mxu0 0.0
    %140 = vmatpush.xpose.msra.mxu0 0.0
    %141 = vmatpush.xpose.msra.mxu0 0.0
    %142 = vmatpush.xpose.msra.mxu0 0.0
    %143 = vmatpush.xpose.msra.mxu0 0.0
    %144 = vmatpush.xpose.msra.mxu0 0.0
    %145 = vmatpush.xpose.msra.mxu0 0.0
    %146 = vmatpush.xpose.msra.mxu0 0.0
    %147 = vmatpush.xpose.msra.mxu0 %v131
    %148 = vmatmul.f32.gmra.mxu0 %v130
    %v149 = vpop.f32.mrf.mxu0
    %v150 = vadd.f32 0.0, %v149
    %151 = vdwg.mxu0
    %v152 = vld [vmem:[%s106] sm:$0xff]
    %v153 = vld [vmem:[%s111] sm:$0x1]
    %155 = vset.pattern.permute.xlu0 0
    %156 = vperm.xlu0 %155, %v152
    %v157 = vpop.permute.xlu0 %156
    %v159 = vmul.f32 %v150, %v157
    %v161 = vperm.slane %v153, 0
    %v163 = vmul.f32 %v159, %v161
    %v164 = vld [vmem:[%s117] sm:$0xff]
    %v165 = vld [vmem:[%s122] sm:$0x1]
    %166 = vset.pattern.permute.xlu0 0
    %167 = vperm.xlu0 %166, %v164
    %v168 = vpop.permute.xlu0 %167
    %v169 = vperm.slane %v165, 0
    %vm170 = vcmp.eq.s32.totalorder %v168, %v169
    %v171 = vmul.f32 %v163, 14.285714
    %v172 = vmul.f32 %v171, 1.442695
    %v173 = vpow.pop %v172
    %v174 = vadd.f32 %v173, 1e-08
    %v175 = vlog2.pop %v174
    %v176 = vmul.f32 %v175, 0.6931472
    %v177 = vsub.f32 0.0, %v176
    %v178 = vadd.f32 %v177, 0.5
    %v179 = vsub.f32 0.5, %v163
    %v180 = vmax.f32 %v179, 0.0
    %v181 = vsel %vm170, %v178, %v180
    %vm182 = vcmp.gt.f32.partialorder %v152, 0.0
    %vm183 = vcmp.gt.f32.partialorder %v153, 0.0
    %v184 = vsel %vm182, 1, 0
    %185 = vset.pattern.permute.xlu0 0
    %186 = vperm.xlu0 %185, %v184
    %v187 = vpop.permute.xlu0 %186
    %vm188 = vcmp.eq.s32.totalorder %v187, 1
    %v189 = vsel %vm183, 1, 0
    %v190 = vperm.slane %v189, 0
    %vm191 = vcmp.eq.s32.totalorder %v190, 1
    %vm192 = vmand %vm188, %vm191
    %v193 = vsel %vm192, %v181, 0.0
    %s194 = sld [smem:[#allocation4]]
    %s195 = sld [smem:[#allocation5]]
    %p196 = scmp.eq.s32.totalorder %s194, %s195
    %s197 = scalar_select %p196, 1.0, 2.0
    %s198 = sld [smem:[#allocation2]]
    %vm199 = vcmask 64512
    %v200 = vsel %vm199, %v193, 0.0
    %201 = vadd.xlane.f32.xlu0 %v200
    %v202 = vpop.xlane.xlu0 %201
    %v203 = vrot.slane %v202, 4
    %v204 = vadd.f32 %v202, %v203
    %v205 = vrot.slane %v204, 2
    %v206 = vadd.f32 %v204, %v205
    %v207 = vrot.slane %v206, 1
    %v208 = vadd.f32 %v206, %v207
    %s209 = vtos %v208
    %s210 = smul.f32 %s197, %s209
    %s211 = sadd.f32 %s198, %s210
    %s212 = scalar_lea.smem [#allocation2], 0
    %213 = sst [smem:[%s212]] %s211
    // Predicated region
    $region30: #{tpu_custom_call.1} parent=1 // pred_check
      %p214 = pneg %p124
    $region31: #{tpu_custom_call.1} parent=1 // pred_check_branch
      %216 = sbr.rel (%p214) target = $region33
    $region32: #{tpu_custom_call.1} parent=1 // pred_region
      %s217 = sld [smem:[#allocation2]]
      %s218 = smul.f32 %s217, 0.015625
      %v219 = vstv %s218
      %220 = vst [vmem:[#allocation6] sm:$0x1] %v219
    $region33: #{tpu_custom_call.1} parent=1 // pred_fallthru
      _
    // Predicated region
    $region34: #{tpu_custom_call.1} parent=1 // pred_check
      _
    $region35: #{tpu_custom_call.1} parent=1 // pred_check_branch
      %222 = sbr.rel (0) target = $region37
    $region36: #{tpu_custom_call.1} parent=1 // pred_region
      %224 = vsyncadd [#allocation7], 0
      %s226 = sshll.u32 [#allocation6], 4
      %s227 = int_to_ptr.vmem [resolvable:$true] %s226
      %s228 = sshll.u32 %s8, 4
      %s229 = int_to_ptr.hbm [resolvable:$true] %s228
      %231 = dma.vmem_to_hbm [thread:$0]  %s227, 16, %s229, [#allocation7]
    $region37: #{tpu_custom_call.1} parent=1 // pred_fallthru
      _
    // Predicated region
    $region38: #{tpu_custom_call.1} parent=1 // pred_check
      _
    $region39: #{tpu_custom_call.1} parent=1 // pred_check_branch
      %233 = sbr.rel (0) target = $region41
    $region40: #{tpu_custom_call.1} parent=1 // pred_region
      %235 = dma.done [#allocation7], 16
    $region41: #{tpu_custom_call.1} parent=1 // pred_fallthru
      _
    %236 = vsyncpa [#allocation7], 1

</llo_original>
